<compile_context>
chip_gen: v7x
topology: tpu7x:2x2x1
jax: 0.10.0
libtpu: 0.0.40
codegen_flags: <defaults>
</compile_context>

<pallas_src>
import math

import jax
import jax.numpy as jnp
from jax import lax
from jax.experimental import pallas as pl
from jax.experimental.pallas import tpu as pltpu


def _round_up(x, m):
    return ((x + m - 1) // m) * m


# ----------------------------------------------------------------------------
# Pallas kernels
# ----------------------------------------------------------------------------
def _rg_fc_kernel(x_ref, w_ref, lm_ref, rm_ref, o_ref, acc_ref, xlm_ref):
    k = pl.program_id(2)

    @pl.when(k == 0)
    def _():
        acc_ref[...] = jnp.zeros_like(acc_ref)
        xlm_ref[...] = jnp.zeros_like(xlm_ref)

    x = x_ref[...]
    # x @ W.T without an explicit transpose: contract x dim 1 with w dim 1.
    acc_ref[...] += lax.dot_general(
        x, w_ref[...],
        dimension_numbers=(((1,), (1,)), ((), ())),
        preferred_element_type=jnp.float32)
    # Low-rank term, reassociated: accumulate (x @ LM) over the h_in axis.
    # LM tile is (tk, K) with K tiny (unpadded to 128) -> negligible MXU work.
    xlm_ref[...] += jnp.dot(x, lm_ref[...], preferred_element_type=jnp.float32)

    @pl.when(k == pl.num_programs(2) - 1)
    def _():
        rg = jnp.dot(xlm_ref[...], rm_ref[...],
                     preferred_element_type=jnp.float32)
        o_ref[...] = (acc_ref[...] + rg).astype(o_ref.dtype)


def _fc_kernel(x_ref, w_ref, o_ref, acc_ref):
    k = pl.program_id(2)

    @pl.when(k == 0)
    def _():
        acc_ref[...] = jnp.zeros_like(acc_ref)

    acc_ref[...] += lax.dot_general(
        x_ref[...], w_ref[...],
        dimension_numbers=(((1,), (1,)), ((), ())),
        preferred_element_type=jnp.float32)

    @pl.when(k == pl.num_programs(2) - 1)
    def _():
        o_ref[...] = acc_ref[...].astype(o_ref.dtype)


# ----------------------------------------------------------------------------
# Wrapper
# ----------------------------------------------------------------------------
def rg_fc_forward(x, weight, lm_stack=None, rm_stack=None, *, rg=True, task=0):
    """Forward pass of RG_FC.

    x:        (batch, h_in)
    weight:   (h_out, h_in)          (PyTorch Linear layout)
    lm_stack: (task_num, h_in, K)    (only if rg)
    rm_stack: (task_num, K, h_out)   (only if rg)
    returns:  (batch, h_out)
    """
    batch, h_in = x.shape
    h_out = weight.shape[0]
    out_dtype = x.dtype
    itemsize = jnp.dtype(out_dtype).itemsize

    # Tile sizes: lane-dense (>=128) output; use the full (128-rounded) dim as
    # a single block when it is small enough (typical LeNet FC layers ->
    # grid of one or a few steps), otherwise stream 512/256 tiles.  Worst case
    # VMEM use (tk=1024, tn=512, tm=128, double-buffered) is ~6 MiB, well under
    # every generation's scoped VMEM including v7x.
    tm = 128 if batch >= 128 else _round_up(batch, 8)
    tn = _round_up(h_out, 128) if h_out <= 512 else 256
    tk = _round_up(h_in, 128) if h_in <= 1024 else 512

    batch_p = _round_up(batch, tm)
    h_out_p = _round_up(h_out, tn)
    h_in_p = _round_up(h_in, tk)

    x_p = x
    if (batch_p, h_in_p) != (batch, h_in):
        x_p = jnp.pad(x, ((0, batch_p - batch), (0, h_in_p - h_in)))
    w_p = weight
    if (h_out_p, h_in_p) != (h_out, h_in):
        w_p = jnp.pad(weight, ((0, h_out_p - h_out), (0, h_in_p - h_in)))

    grid = (batch_p // tm, h_out_p // tn, h_in_p // tk)
    grid_i, grid_j, grid_k = grid
    out_shape = jax.ShapeDtypeStruct((batch_p, h_out_p), out_dtype)

    x_spec = pl.BlockSpec((tm, tk), lambda i, j, k: (i, k))
    w_spec = pl.BlockSpec((tn, tk), lambda i, j, k: (j, k))
    o_spec = pl.BlockSpec((tm, tn), lambda i, j, k: (i, j))

    compiler_params = pltpu.CompilerParams(
        dimension_semantics=("parallel", "parallel", "arbitrary"),
        vmem_limit_bytes=32 * 1024 * 1024)

    if rg:
        task_num, _, K = lm_stack.shape
        # Only pad K to the sublane quantum (8); keeping it narrow avoids the
        # extra HBM traffic / MXU work a 128-wide pad would cost.
        K_p = _round_up(K, 8)

        lm_p = lm_stack
        if (h_in_p, K_p) != (h_in, K):
            lm_p = jnp.pad(lm_stack,
                           ((0, 0), (0, h_in_p - h_in), (0, K_p - K)))
        rm_p = rm_stack
        if (K_p, h_out_p) != (K, h_out):
            rm_p = jnp.pad(rm_stack,
                           ((0, 0), (0, K_p - K), (0, h_out_p - h_out)))

        # Select the task slab inside the pipeline via the index_map (static
        # task index -> no separate XLA slice/copy of LM/RM before the kernel).
        lm_spec = pl.BlockSpec((None, tk, K_p), lambda i, j, k: (task, k, 0))
        rm_spec = pl.BlockSpec((None, K_p, tn), lambda i, j, k: (task, 0, j))

        flops = (2 * batch_p * h_in_p * h_out_p
                 + 2 * batch_p * h_in_p * K_p * grid_j     # x@LM per j tile
                 + 2 * batch_p * K_p * h_out_p)            # xlm@RM
        bytes_accessed = (grid_i * w_p.size                # weight stream per i
                          + grid_j * (x_p.size + lm_p[0].size)
                          + rm_p[0].size
                          + batch_p * h_out_p) * itemsize
        cost = pl.CostEstimate(flops=flops, transcendentals=0,
                               bytes_accessed=bytes_accessed)

        out = pl.pallas_call(
            _rg_fc_kernel,
            out_shape=out_shape,
            grid=grid,
            in_specs=[x_spec, w_spec, lm_spec, rm_spec],
            out_specs=o_spec,
            scratch_shapes=[pltpu.VMEM((tm, tn), jnp.float32),
                            pltpu.VMEM((tm, K_p), jnp.float32)],
            compiler_params=compiler_params,
            cost_estimate=cost,
        )(x_p, w_p, lm_p, rm_p)
    else:
        flops = 2 * batch_p * h_in_p * h_out_p
        bytes_accessed = (grid_i * w_p.size + grid_j * x_p.size
                          + batch_p * h_out_p) * itemsize
        cost = pl.CostEstimate(flops=flops, transcendentals=0,
                               bytes_accessed=bytes_accessed)

        out = pl.pallas_call(
            _fc_kernel,
            out_shape=out_shape,
            grid=grid,
            in_specs=[x_spec, w_spec],
            out_specs=o_spec,
            scratch_shapes=[pltpu.VMEM((tm, tn), jnp.float32)],
            compiler_params=compiler_params,
            cost_estimate=cost,
        )(x_p, w_p)

    return out[:batch, :h_out]


# ----------------------------------------------------------------------------
# Deterministic parameter init (kaiming_uniform_ analogue)
# ----------------------------------------------------------------------------
def kaiming_uniform(key, shape, dtype=jnp.float32):
    # torch.nn.init.kaiming_uniform_ defaults: a=0, mode='fan_in',
    # nonlinearity='leaky_relu' -> gain=sqrt(2), bound = gain*sqrt(3/fan_in)
    fan_in = shape[1]
    bound = math.sqrt(2.0) * math.sqrt(3.0 / fan_in)
    return jax.random.uniform(key, shape, dtype, minval=-bound, maxval=bound)


def _reference(x, weight, lm_stack, rm_stack, rg, task):
    if rg:
        R = lm_stack[task] @ rm_stack[task]      # (h_in, h_out)
        w_eff = R.T + weight                     # (h_out, h_in)
    else:
        w_eff = weight
    return x @ w_eff.T


if __name__ == "__main__":
    root = jax.random.PRNGKey(0)

    # --- Small shapes consistent with the module's forward ---------------
    batch, h_in, h_out, K, task_num = 8, 32, 32, 8, 3
    task, scale = 1, 0.1

    k_x, k_w, k_lm, k_rm, k2 = jax.random.split(root, 5)
    x = jax.random.normal(k_x, (batch, h_in), dtype=jnp.float32)
    weight = kaiming_uniform(k_w, (h_out, h_in))                   # (h_out, h_in)
    lm_stack = jnp.stack([kaiming_uniform(k, (h_in, K)) * scale
                          for k in jax.random.split(k_lm, task_num)])
    rm_stack = jnp.stack([kaiming_uniform(k, (K, h_out)) * scale
                          for k in jax.random.split(k_rm, task_num)])

    out = jax.block_until_ready(
        rg_fc_forward(x, weight, lm_stack, rm_stack, rg=True, task=task))
    ref = _reference(x, weight, lm_stack, rm_stack, True, task)
    assert out.shape == (batch, h_out)
    assert jnp.allclose(out, ref, atol=1e-4, rtol=1e-4)

    # RG=False path.
    out_plain = jax.block_until_ready(rg_fc_forward(x, weight, rg=False))
    assert jnp.allclose(out_plain, x @ weight.T, atol=1e-4, rtol=1e-4)

    # --- Medium case: exercises large single-block tiles and all task slabs --
    b2, hi2, ho2, K2 = 16, 1024, 512, 8
    kx2, kw2, kl2, kr2 = jax.random.split(k2, 4)
    x2 = jax.random.normal(kx2, (b2, hi2), dtype=jnp.float32)
    w2 = kaiming_uniform(kw2, (ho2, hi2))
    lm2 = jnp.stack([kaiming_uniform(k, (hi2, K2)) * scale
                     for k in jax.random.split(kl2, task_num)])
    rm2 = jnp.stack([kaiming_uniform(k, (K2, ho2)) * scale
                     for k in jax.random.split(kr2, task_num)])
    out2 = jax.block_until_ready(
        rg_fc_forward(x2, w2, lm2, rm2, rg=True, task=2))
    ref2 = _reference(x2, w2, lm2, rm2, True, 2)
    assert jnp.allclose(out2, ref2, atol=1e-3, rtol=1e-4)

    # --- Larger case to exercise multi-tile accumulation along h_in ------
    b3, hi3, ho3 = 32, 2048, 768
    kx3, kw3, kl3, kr3 = jax.random.split(kx2, 4)
    x3 = jax.random.normal(kx3, (b3, hi3), dtype=jnp.float32)
    w3 = kaiming_uniform(kw3, (ho3, hi3))
    lm3 = jnp.stack([kaiming_uniform(k, (hi3, K2)) * scale
                     for k in jax.random.split(kl3, task_num)])
    rm3 = jnp.stack([kaiming_uniform(k, (K2, ho3)) * scale
                     for k in jax.random.split(kr3, task_num)])
    out3 = jax.block_until_ready(
        rg_fc_forward(x3, w3, lm3, rm3, rg=True, task=0))
    ref3 = _reference(x3, w3, lm3, rm3, True, 0)
    assert jnp.allclose(out3, ref3, atol=1e-3, rtol=1e-4)

    print("KERNEL_OK")
</pallas_src>

<mosaic_0001>
module attributes {stable_mosaic.version = 11 : i64} {
  func.func @_rg_fc_kernel(%arg0: i32, %arg1: i32, %arg2: i32, %arg3: memref<8x128xf32, #tpu.memory_space<vmem>>, %arg4: memref<128x128xf32, #tpu.memory_space<vmem>>, %arg5: memref<1x128x8xf32, #tpu.memory_space<vmem>>, %arg6: memref<1x8x128xf32, #tpu.memory_space<vmem>>, %arg7: memref<8x128xf32, #tpu.memory_space<vmem>>, %arg8: memref<8x128xf32, #tpu.memory_space<vmem>>, %arg9: memref<8x8xf32, #tpu.memory_space<vmem>>) attributes {dimension_semantics = [#tpu.dimension_semantics<parallel>, #tpu.dimension_semantics<parallel>, #tpu.dimension_semantics<arbitrary>], iteration_bounds = array<i64: 1, 1, 1>, scalar_prefetch = 0 : i64, scratch_operands = 2 : i64, tpu.core_type = #tpu.core_type<tc>, window_params = [{transform_indices = @transform_0, window_bounds = array<i64: 8, 128>}, {transform_indices = @transform_1, window_bounds = array<i64: 128, 128>}, {transform_indices = @transform_2, window_bounds = array<i64: 1, 128, 8>}, {transform_indices = @transform_3, window_bounds = array<i64: 1, 8, 128>}, {transform_indices = @transform_4, window_bounds = array<i64: 8, 128>}]} {
    %c0_i32 = arith.constant 0 : i32
    %0 = arith.cmpi eq, %arg2, %c0_i32 : i32
    %1 = arith.extui %0 : i1 to i32
    %c0_i32_0 = arith.constant 0 : i32
    %2 = arith.cmpi ne, %1, %c0_i32_0 : i32
    scf.if %2 {
      %cst_18 = arith.constant 0.000000e+00 : f32
      %18 = vector.broadcast %cst_18 : f32 to vector<8x128xf32>
      %c0_19 = arith.constant 0 : index
      %c0_20 = arith.constant 0 : index
      %19 = vector.load %arg8[%c0_19, %c0_20] : memref<8x128xf32, #tpu.memory_space<vmem>>, vector<8x128xf32>
      tpu.vector_store %arg8[%c0_19, %c0_20], %18 {strides = array<i32>} : memref<8x128xf32, #tpu.memory_space<vmem>>, vector<8x128xf32>,
      %cst_21 = arith.constant 0.000000e+00 : f32
      %20 = vector.broadcast %cst_21 : f32 to vector<8x8xf32>
      %c0_22 = arith.constant 0 : index
      %c0_23 = arith.constant 0 : index
      %21 = vector.load %arg9[%c0_22, %c0_23] : memref<8x8xf32, #tpu.memory_space<vmem>>, vector<8x8xf32>
      tpu.vector_store %arg9[%c0_22, %c0_23], %20 {strides = array<i32>} : memref<8x8xf32, #tpu.memory_space<vmem>>, vector<8x8xf32>,
    } else {
    }
    %c0 = arith.constant 0 : index
    %c0_1 = arith.constant 0 : index
    %3 = vector.load %arg3[%c0, %c0_1] : memref<8x128xf32, #tpu.memory_space<vmem>>, vector<8x128xf32>
    %c0_2 = arith.constant 0 : index
    %c0_3 = arith.constant 0 : index
    %4 = vector.load %arg8[%c0_2, %c0_3] : memref<8x128xf32, #tpu.memory_space<vmem>>, vector<8x128xf32>
    %c0_4 = arith.constant 0 : index
    %c0_5 = arith.constant 0 : index
    %5 = vector.load %arg4[%c0_4, %c0_5] : memref<128x128xf32, #tpu.memory_space<vmem>>, vector<128x128xf32>
    %cst = arith.constant dense<0.000000e+00> : vector<8x128xf32>
    %6 = tpu.matmul %3, %5, %cst {dimension_numbers = #tpu.dot_dimension_numbers<[1], [1], [0], [0], [0, 0, 1, 0], [], []>} : vector<8x128xf32>, vector<128x128xf32>, vector<8x128xf32> -> vector<8x128xf32>
    %7 = arith.addf %4, %6 : vector<8x128xf32>
    %c0_6 = arith.constant 0 : index
    %c0_7 = arith.constant 0 : index
    %8 = vector.load %arg8[%c0_6, %c0_7] : memref<8x128xf32, #tpu.memory_space<vmem>>, vector<8x128xf32>
    tpu.vector_store %arg8[%c0_6, %c0_7], %7 {strides = array<i32>} : memref<8x128xf32, #tpu.memory_space<vmem>>, vector<8x128xf32>,
    %c0_8 = arith.constant 0 : index
    %c0_9 = arith.constant 0 : index
    %9 = vector.load %arg9[%c0_8, %c0_9] : memref<8x8xf32, #tpu.memory_space<vmem>>, vector<8x8xf32>
    %c0_10 = arith.constant 0 : index
    %c0_11 = arith.constant 0 : index
    %c0_12 = arith.constant 0 : index
    %10 = vector.load %arg5[%c0_10, %c0_11, %c0_12] : memref<1x128x8xf32, #tpu.memory_space<vmem>>, vector<1x128x8xf32>
    %11 = vector.shape_cast %10 : vector<1x128x8xf32> to vector<128x8xf32>
    %cst_13 = arith.constant dense<0.000000e+00> : vector<8x8xf32>
    %12 = tpu.matmul %3, %11, %cst_13 {dimension_numbers = #tpu.dot_dimension_numbers<[1], [0], [0], [1], [0, 0, 1, 1], [], []>} : vector<8x128xf32>, vector<128x8xf32>, vector<8x8xf32> -> vector<8x8xf32>
    %13 = arith.addf %9, %12 : vector<8x8xf32>
    %c0_14 = arith.constant 0 : index
    %c0_15 = arith.constant 0 : index
    %14 = vector.load %arg9[%c0_14, %c0_15] : memref<8x8xf32, #tpu.memory_space<vmem>>, vector<8x8xf32>
    tpu.vector_store %arg9[%c0_14, %c0_15], %13 {strides = array<i32>} : memref<8x8xf32, #tpu.memory_space<vmem>>, vector<8x8xf32>,
    %c0_i32_16 = arith.constant 0 : i32
    %15 = arith.cmpi eq, %arg2, %c0_i32_16 : i32
    %16 = arith.extui %15 : i1 to i32
    %c0_i32_17 = arith.constant 0 : i32
    %17 = arith.cmpi ne, %16, %c0_i32_17 : i32
    scf.if %17 {
      %c0_18 = arith.constant 0 : index
      %c0_19 = arith.constant 0 : index
      %18 = vector.load %arg9[%c0_18, %c0_19] : memref<8x8xf32, #tpu.memory_space<vmem>>, vector<8x8xf32>
      %c0_20 = arith.constant 0 : index
      %c0_21 = arith.constant 0 : index
      %c0_22 = arith.constant 0 : index
      %19 = vector.load %arg6[%c0_20, %c0_21, %c0_22] : memref<1x8x128xf32, #tpu.memory_space<vmem>>, vector<1x8x128xf32>
      %20 = vector.shape_cast %19 : vector<1x8x128xf32> to vector<8x128xf32>
      %cst_23 = arith.constant dense<0.000000e+00> : vector<8x128xf32>
      %21 = tpu.matmul %18, %20, %cst_23 {dimension_numbers = #tpu.dot_dimension_numbers<[1], [0], [0], [1], [0, 0, 1, 1], [], []>} : vector<8x8xf32>, vector<8x128xf32>, vector<8x128xf32> -> vector<8x128xf32>
      %c0_24 = arith.constant 0 : index
      %c0_25 = arith.constant 0 : index
      %22 = vector.load %arg8[%c0_24, %c0_25] : memref<8x128xf32, #tpu.memory_space<vmem>>, vector<8x128xf32>
      %23 = arith.addf %22, %21 : vector<8x128xf32>
      %c0_26 = arith.constant 0 : index
      %c0_27 = arith.constant 0 : index
      %24 = vector.load %arg7[%c0_26, %c0_27] : memref<8x128xf32, #tpu.memory_space<vmem>>, vector<8x128xf32>
      tpu.vector_store %arg7[%c0_26, %c0_27], %23 {strides = array<i32>} : memref<8x128xf32, #tpu.memory_space<vmem>>, vector<8x128xf32>,
    } else {
    }
    return
  }
  func.func @transform_0(%arg0: i32, %arg1: i32, %arg2: i32) -> (i32, i32) {
    %c0_i32 = arith.constant 0 : i32
    return %arg0, %arg2 : i32, i32
  }
  func.func @transform_1(%arg0: i32, %arg1: i32, %arg2: i32) -> (i32, i32) {
    %c0_i32 = arith.constant 0 : i32
    return %arg1, %arg2 : i32, i32
  }
  func.func @transform_2(%arg0: i32, %arg1: i32, %arg2: i32) -> (i32, i32, i32) {
    %c1_i32 = arith.constant 1 : i32
    %c0_i32 = arith.constant 0 : i32
    %c0_i32_0 = arith.constant 0 : i32
    return %c1_i32, %arg2, %c0_i32 : i32, i32, i32
  }
  func.func @transform_3(%arg0: i32, %arg1: i32, %arg2: i32) -> (i32, i32, i32) {
    %c1_i32 = arith.constant 1 : i32
    %c0_i32 = arith.constant 0 : i32
    %c0_i32_0 = arith.constant 0 : i32
    return %c1_i32, %c0_i32, %arg1 : i32, i32, i32
  }
  func.func @transform_4(%arg0: i32, %arg1: i32, %arg2: i32) -> (i32, i32) {
    %c0_i32 = arith.constant 0 : i32
    return %arg0, %arg1 : i32, i32
  }
}

</mosaic_0001>

<llo_original>
// kernel: tpu_custom_call.1
$region0: #{tpu_custom_call.1}
  #allocation0 [shape = 'u32[]', space=smem, size = 0x4, offset = 0x4, fixed_abs, tag = 'smem constant byte address 0x4 - core index']
  #allocation1 [shape = 'u32[144,128]{1,0:T(1,128)}', space=vmem, size = 0x12000, scoped, tag = 'internal scratch']
  #allocation2 [shape = 'f32[8,128]{1,0:T(8,128)}', space=vmem, size = 0x1000, scoped, tag = 'scratch operand']
  #allocation3 [shape = 'f32[8,8]{1,0:T(8,128)}', space=vmem, size = 0x1000, scoped, tag = 'scratch operand']
  %s0 = inlined_call_operand.vmem [shape: f32[8,128], index: 0, kind: input, shape index: {}]
  %s1 = inlined_call_operand.vmem [shape: f32[128,128], index: 1, kind: input, shape index: {}]
  %s2 = inlined_call_operand.vmem [shape: f32[3,128,8], index: 2, kind: input, shape index: {}]
  %s3 = inlined_call_operand.vmem [shape: f32[3,8,128], index: 3, kind: input, shape index: {}]
  %s4 = inlined_call_operand.hbm [shape: f32[8,128], index: 4, kind: output, shape index: {}]
  %s5 = sld [smem:[#allocation0]]
  $region34: #{tpu_custom_call.1} parent=0
    _
  %s7 = ssub.s32 1, %s5
  %s8 = scalar_select 0, %s7, %s5
  $region1: #{tpu_custom_call.1} parent=0
    #allocation4 [shape = 'u8[4096]{0}', space=vmem, size = 0x1000, scoped, tag = 'output window, operand 0, single buffered']
    #allocation5 [shape = 's32[1]{0}', space=sflag, size = 0x4, scoped, tag = 'scoped memory for tpu_custom_call.1']
    %9 = vsyncpa [#allocation5], 0
    // Predicated region
    $region2: #{tpu_custom_call.1} parent=1 // pred_check
      _
    $region3: #{tpu_custom_call.1} parent=1 // pred_check_branch
      %11 = sbr.rel (0) target = $region5
    $region4: #{tpu_custom_call.1} parent=1 // pred_region
      _
    $region5: #{tpu_custom_call.1} parent=1 // pred_fallthru
      _
    // Predicated region
    $region6: #{tpu_custom_call.1} parent=1 // pred_check
      _
    $region7: #{tpu_custom_call.1} parent=1 // pred_check_branch
      %13 = sbr.rel (0) target = $region9
    $region8: #{tpu_custom_call.1} parent=1 // pred_region
      _
    $region9: #{tpu_custom_call.1} parent=1 // pred_fallthru
      _
    // Predicated region
    $region10: #{tpu_custom_call.1} parent=1 // pred_check
      _
    $region11: #{tpu_custom_call.1} parent=1 // pred_check_branch
      %15 = sbr.rel (0) target = $region13
    $region12: #{tpu_custom_call.1} parent=1 // pred_region
      %s16 = scalar_lea.vmem %s2, 128
    $region13: #{tpu_custom_call.1} parent=1 // pred_fallthru
      _
    // Predicated region
    $region14: #{tpu_custom_call.1} parent=1 // pred_check
      _
    $region15: #{tpu_custom_call.1} parent=1 // pred_check_branch
      %18 = sbr.rel (0) target = $region17
    $region16: #{tpu_custom_call.1} parent=1 // pred_region
      %s19 = scalar_lea.vmem %s3, 8
    $region17: #{tpu_custom_call.1} parent=1 // pred_fallthru
      _
    %s20 = scalar_lea.vmem %s2, 128
    %s21 = scalar_lea.vmem %s3, 8
    %s22 = scalar_lea.vmem %s2, 128
    %s23 = scalar_lea.vmem %s3, 8
    %p24 = scmp.eq.s32.totalorder 0, 0
    // Predicated region
    $region18: #{tpu_custom_call.1} parent=1 // pred_check
      %p25 = pneg %p24
    $region19: #{tpu_custom_call.1} parent=1 // pred_check_branch
      %27 = sbr.rel (%p25) target = $region21
    $region20: #{tpu_custom_call.1} parent=1 // pred_region
      %28 = vst [vmem:[#allocation2] sm:$0xff] 0.0
      %vm29 = vcmask 64512
      %30 = vst.msk [vmem:[#allocation3] sm:$0xff] %vm29, 0.0
    $region21: #{tpu_custom_call.1} parent=1 // pred_fallthru
      _
    %v31 = vld [vmem:[%s0] sm:$0xff]
    %v32 = vld [vmem:[#allocation2] sm:$0xff]
    %v33 = vld [vmem:[%s1] sm:$0xff]
    %v34 = vld [vmem:[%s1 + $0x8] sm:$0xff]
    %v35 = vld [vmem:[%s1 + $0x10] sm:$0xff]
    %v36 = vld [vmem:[%s1 + $0x18] sm:$0xff]
    %v37 = vld [vmem:[%s1 + $0x20] sm:$0xff]
    %v38 = vld [vmem:[%s1 + $0x28] sm:$0xff]
    %v39 = vld [vmem:[%s1 + $0x30] sm:$0xff]
    %v40 = vld [vmem:[%s1 + $0x38] sm:$0xff]
    %v41 = vld [vmem:[%s1 + $0x40] sm:$0xff]
    %v42 = vld [vmem:[%s1 + $0x48] sm:$0xff]
    %v43 = vld [vmem:[%s1 + $0x50] sm:$0xff]
    %v44 = vld [vmem:[%s1 + $0x58] sm:$0xff]
    %v45 = vld [vmem:[%s1 + $0x60] sm:$0xff]
    %v46 = vld [vmem:[%s1 + $0x68] sm:$0xff]
    %v47 = vld [vmem:[%s1 + $0x70] sm:$0xff]
    %v48 = vld [vmem:[%s1 + $0x78] sm:$0xff]
    %49 = vmatprep.subr.mxu0 0.0
    %50 = vmatpush1.xpose.msra.mxu0 %v33
    %51 = vmatprep.subr.mxu0 0.0
    %52 = vmatpush1.xpose.msra.mxu0 %v34
    %53 = vmatprep.subr.mxu0 0.0
    %54 = vmatpush1.xpose.msra.mxu0 %v35
    %55 = vmatprep.subr.mxu0 0.0
    %56 = vmatpush1.xpose.msra.mxu0 %v36
    %57 = vmatprep.subr.mxu0 0.0
    %58 = vmatpush1.xpose.msra.mxu0 %v37
    %59 = vmatprep.subr.mxu0 0.0
    %60 = vmatpush1.xpose.msra.mxu0 %v38
    %61 = vmatprep.subr.mxu0 0.0
    %62 = vmatpush1.xpose.msra.mxu0 %v39
    %63 = vmatprep.subr.mxu0 0.0
    %64 = vmatpush1.xpose.msra.mxu0 %v40
    %65 = vmatprep.subr.mxu0 0.0
    %66 = vmatpush1.xpose.msra.mxu0 %v41
    %67 = vmatprep.subr.mxu0 0.0
    %68 = vmatpush1.xpose.msra.mxu0 %v42
    %69 = vmatprep.subr.mxu0 0.0
    %70 = vmatpush1.xpose.msra.mxu0 %v43
    %71 = vmatprep.subr.mxu0 0.0
    %72 = vmatpush1.xpose.msra.mxu0 %v44
    %73 = vmatprep.subr.mxu0 0.0
    %74 = vmatpush1.xpose.msra.mxu0 %v45
    %75 = vmatprep.subr.mxu0 0.0
    %76 = vmatpush1.xpose.msra.mxu0 %v46
    %77 = vmatprep.subr.mxu0 0.0
    %78 = vmatpush1.xpose.msra.mxu0 %v47
    %79 = vmatprep.subr.mxu0 0.0
    %80 = vmatpush1.xpose.msra.mxu0 %v48
    %81 = vmatprep.subr.mxu0 0.0
    %82 = vmatpush1.xpose.msra.mxu0 0.0
    %83 = vmatprep.subr.mxu0 0.0
    %84 = vmatpush1.xpose.msra.mxu0 0.0
    %85 = vmatprep.subr.mxu0 0.0
    %86 = vmatpush1.xpose.msra.mxu0 0.0
    %87 = vmatprep.subr.mxu0 0.0
    %88 = vmatpush1.xpose.msra.mxu0 0.0
    %89 = vmatprep.subr.mxu0 0.0
    %90 = vmatpush1.xpose.msra.mxu0 0.0
    %91 = vmatprep.subr.mxu0 0.0
    %92 = vmatpush1.xpose.msra.mxu0 0.0
    %93 = vmatprep.subr.mxu0 0.0
    %94 = vmatpush1.xpose.msra.mxu0 0.0
    %95 = vmatprep.subr.mxu0 0.0
    %96 = vmatpush1.xpose.msra.mxu0 0.0
    %97 = vmatprep.subr.mxu0 0.0
    %98 = vmatpush1.xpose.msra.mxu0 0.0
    %99 = vmatprep.subr.mxu0 0.0
    %100 = vmatpush1.xpose.msra.mxu0 0.0
    %101 = vmatprep.subr.mxu0 0.0
    %102 = vmatpush1.xpose.msra.mxu0 0.0
    %103 = vmatprep.subr.mxu0 0.0
    %104 = vmatpush1.xpose.msra.mxu0 0.0
    %105 = vmatprep.subr.mxu0 0.0
    %106 = vmatpush1.xpose.msra.mxu0 0.0
    %107 = vmatprep.subr.mxu0 0.0
    %108 = vmatpush1.xpose.msra.mxu0 0.0
    %109 = vmatprep.subr.mxu0 0.0
    %110 = vmatpush1.xpose.msra.mxu0 0.0
    %111 = vmatprep.subr.mxu0 0.0
    %112 = vmatpush1.xpose.msra.mxu0 0.0
    %113 = vmatprep.mubr.f32.mxu0 0.0
    %114 = vmatmul.mubr.f32.gmra.mrb[0].mxu0 %v31
    %v115 = vpop.f32.mrb[0].mxu0
    %v116 = vadd.f32 0.0, %v115
    %v117 = vpop.f32.mrb[0].mxu0
    %118 = vdwg.mxu0
    %v119 = vadd.f32 %v32, %v116
    %120 = vst [vmem:[#allocation2] sm:$0xff] %v119
    %v121 = vld [vmem:[#allocation3] sm:$0xff]
    %v122 = vld [vmem:[%s22] sm:$0xff]
    %v123 = vld [vmem:[%s22 + $0x8] sm:$0xff]
    %v124 = vld [vmem:[%s22 + $0x10] sm:$0xff]
    %v125 = vld [vmem:[%s22 + $0x18] sm:$0xff]
    %v126 = vld [vmem:[%s22 + $0x20] sm:$0xff]
    %v127 = vld [vmem:[%s22 + $0x28] sm:$0xff]
    %v128 = vld [vmem:[%s22 + $0x30] sm:$0xff]
    %v129 = vld [vmem:[%s22 + $0x38] sm:$0xff]
    %v130 = vld [vmem:[%s22 + $0x40] sm:$0xff]
    %v131 = vld [vmem:[%s22 + $0x48] sm:$0xff]
    %v132 = vld [vmem:[%s22 + $0x50] sm:$0xff]
    %v133 = vld [vmem:[%s22 + $0x58] sm:$0xff]
    %v134 = vld [vmem:[%s22 + $0x60] sm:$0xff]
    %v135 = vld [vmem:[%s22 + $0x68] sm:$0xff]
    %v136 = vld [vmem:[%s22 + $0x70] sm:$0xff]
    %v137 = vld [vmem:[%s22 + $0x78] sm:$0xff]
    %138 = vmatprep.subr.mxu0 0.0
    %139 = vmatpush1.msra.mxu0 %v122
    %140 = vmatprep.subr.mxu0 0.0
    %141 = vmatpush1.msra.mxu0 %v123
    %142 = vmatprep.subr.mxu0 0.0
    %143 = vmatpush1.msra.mxu0 %v124
    %144 = vmatprep.subr.mxu0 0.0
    %145 = vmatpush1.msra.mxu0 %v125
    %146 = vmatprep.subr.mxu0 0.0
    %147 = vmatpush1.msra.mxu0 %v126
    %148 = vmatprep.subr.mxu0 0.0
    %149 = vmatpush1.msra.mxu0 %v127
    %150 = vmatprep.subr.mxu0 0.0
    %151 = vmatpush1.msra.mxu0 %v128
    %152 = vmatprep.subr.mxu0 0.0
    %153 = vmatpush1.msra.mxu0 %v129
    %154 = vmatprep.subr.mxu0 0.0
    %155 = vmatpush1.msra.mxu0 %v130
    %156 = vmatprep.subr.mxu0 0.0
    %157 = vmatpush1.msra.mxu0 %v131
    %158 = vmatprep.subr.mxu0 0.0
    %159 = vmatpush1.msra.mxu0 %v132
    %160 = vmatprep.subr.mxu0 0.0
    %161 = vmatpush1.msra.mxu0 %v133
    %162 = vmatprep.subr.mxu0 0.0
    %163 = vmatpush1.msra.mxu0 %v134
    %164 = vmatprep.subr.mxu0 0.0
    %165 = vmatpush1.msra.mxu0 %v135
    %166 = vmatprep.subr.mxu0 0.0
    %167 = vmatpush1.msra.mxu0 %v136
    %168 = vmatprep.subr.mxu0 0.0
    %169 = vmatpush1.msra.mxu0 %v137
    %170 = vmatprep.subr.mxu0 0.0
    %171 = vmatpush1.msra.mxu0 0.0
    %172 = vmatprep.subr.mxu0 0.0
    %173 = vmatpush1.msra.mxu0 0.0
    %174 = vmatprep.subr.mxu0 0.0
    %175 = vmatpush1.msra.mxu0 0.0
    %176 = vmatprep.subr.mxu0 0.0
    %177 = vmatpush1.msra.mxu0 0.0
    %178 = vmatprep.subr.mxu0 0.0
    %179 = vmatpush1.msra.mxu0 0.0
    %180 = vmatprep.subr.mxu0 0.0
    %181 = vmatpush1.msra.mxu0 0.0
    %182 = vmatprep.subr.mxu0 0.0
    %183 = vmatpush1.msra.mxu0 0.0
    %184 = vmatprep.subr.mxu0 0.0
    %185 = vmatpush1.msra.mxu0 0.0
    %186 = vmatprep.subr.mxu0 0.0
    %187 = vmatpush1.msra.mxu0 0.0
    %188 = vmatprep.subr.mxu0 0.0
    %189 = vmatpush1.msra.mxu0 0.0
    %190 = vmatprep.subr.mxu0 0.0
    %191 = vmatpush1.msra.mxu0 0.0
    %192 = vmatprep.subr.mxu0 0.0
    %193 = vmatpush1.msra.mxu0 0.0
    %194 = vmatprep.subr.mxu0 0.0
    %195 = vmatpush1.msra.mxu0 0.0
    %196 = vmatprep.subr.mxu0 0.0
    %197 = vmatpush1.msra.mxu0 0.0
    %198 = vmatprep.subr.mxu0 0.0
    %199 = vmatpush1.msra.mxu0 0.0
    %200 = vmatprep.subr.mxu0 0.0
    %201 = vmatpush1.msra.mxu0 0.0
    %202 = vmatprep.mubr.f32.mxu0 0.0
    %203 = vmatmul.mubr.f32.gmra.mrb[0].mxu0 %v31
    %v204 = vpop.f32.mrb[0].mxu0
    %v205 = vadd.f32 0.0, %v204
    %v206 = vpop.f32.mrb[0].mxu0
    %207 = vdwg.mxu0
    %v208 = vadd.f32 %v121, %v205
    %vm209 = vcmask 64512
    %210 = vst.msk [vmem:[#allocation3] sm:$0xff] %vm209, %v208
    // Predicated region
    $region22: #{tpu_custom_call.1} parent=1 // pred_check
      %p211 = pneg %p24
    $region23: #{tpu_custom_call.1} parent=1 // pred_check_branch
      %213 = sbr.rel (%p211) target = $region25
    $region24: #{tpu_custom_call.1} parent=1 // pred_region
      %v214 = vld [vmem:[#allocation3] sm:$0xff]
      %v215 = vld [vmem:[%s23] sm:$0xff]
      %v217 = vsel %vm209, %v214, 0
      %219 = vmatprep.subr.mxu0 0.0
      %220 = vmatpush1.msra.mxu0 %v215
      %221 = vmatprep.subr.mxu0 0.0
      %222 = vmatpush1.msra.mxu0 0.0
      %223 = vmatprep.subr.mxu0 0.0
      %224 = vmatpush1.msra.mxu0 0.0
      %225 = vmatprep.subr.mxu0 0.0
      %226 = vmatpush1.msra.mxu0 0.0
      %227 = vmatprep.subr.mxu0 0.0
      %228 = vmatpush1.msra.mxu0 0.0
      %229 = vmatprep.subr.mxu0 0.0
      %230 = vmatpush1.msra.mxu0 0.0
      %231 = vmatprep.subr.mxu0 0.0
      %232 = vmatpush1.msra.mxu0 0.0
      %233 = vmatprep.subr.mxu0 0.0
      %234 = vmatpush1.msra.mxu0 0.0
      %235 = vmatprep.subr.mxu0 0.0
      %236 = vmatpush1.msra.mxu0 0.0
      %237 = vmatprep.subr.mxu0 0.0
      %238 = vmatpush1.msra.mxu0 0.0
      %239 = vmatprep.subr.mxu0 0.0
      %240 = vmatpush1.msra.mxu0 0.0
      %241 = vmatprep.subr.mxu0 0.0
      %242 = vmatpush1.msra.mxu0 0.0
      %243 = vmatprep.subr.mxu0 0.0
      %244 = vmatpush1.msra.mxu0 0.0
      %245 = vmatprep.subr.mxu0 0.0
      %246 = vmatpush1.msra.mxu0 0.0
      %247 = vmatprep.subr.mxu0 0.0
      %248 = vmatpush1.msra.mxu0 0.0
      %249 = vmatprep.subr.mxu0 0.0
      %250 = vmatpush1.msra.mxu0 0.0
      %251 = vmatprep.subr.mxu0 0.0
      %252 = vmatpush1.msra.mxu0 0.0
      %253 = vmatprep.subr.mxu0 0.0
      %254 = vmatpush1.msra.mxu0 0.0
      %255 = vmatprep.subr.mxu0 0.0
      %256 = vmatpush1.msra.mxu0 0.0
      %257 = vmatprep.subr.mxu0 0.0
      %258 = vmatpush1.msra.mxu0 0.0
      %259 = vmatprep.subr.mxu0 0.0
      %260 = vmatpush1.msra.mxu0 0.0
      %261 = vmatprep.subr.mxu0 0.0
      %262 = vmatpush1.msra.mxu0 0.0
      %263 = vmatprep.subr.mxu0 0.0
      %264 = vmatpush1.msra.mxu0 0.0
      %265 = vmatprep.subr.mxu0 0.0
      %266 = vmatpush1.msra.mxu0 0.0
      %267 = vmatprep.subr.mxu0 0.0
      %268 = vmatpush1.msra.mxu0 0.0
      %269 = vmatprep.subr.mxu0 0.0
      %270 = vmatpush1.msra.mxu0 0.0
      %271 = vmatprep.subr.mxu0 0.0
      %272 = vmatpush1.msra.mxu0 0.0
      %273 = vmatprep.subr.mxu0 0.0
      %274 = vmatpush1.msra.mxu0 0.0
      %275 = vmatprep.subr.mxu0 0.0
      %276 = vmatpush1.msra.mxu0 0.0
      %277 = vmatprep.subr.mxu0 0.0
      %278 = vmatpush1.msra.mxu0 0.0
      %279 = vmatprep.subr.mxu0 0.0
      %280 = vmatpush1.msra.mxu0 0.0
      %281 = vmatprep.subr.mxu0 0.0
      %282 = vmatpush1.msra.mxu0 0.0
      %283 = vmatprep.mubr.f32.mxu0 0.0
      %284 = vmatmul.mubr.f32.gmra.mrb[0].mxu0 %v217
      %v285 = vpop.f32.mrb[0].mxu0
      %v286 = vadd.f32 0.0, %v285
      %v287 = vpop.f32.mrb[0].mxu0
      %288 = vdwg.mxu0
      %v289 = vld [vmem:[#allocation2] sm:$0xff]
      %v290 = vadd.f32 %v289, %v286
      %291 = vst [vmem:[#allocation4] sm:$0xff] %v290
    $region25: #{tpu_custom_call.1} parent=1 // pred_fallthru
      _
    // Predicated region
    $region26: #{tpu_custom_call.1} parent=1 // pred_check
      _
    $region27: #{tpu_custom_call.1} parent=1 // pred_check_branch
      %293 = sbr.rel (0) target = $region29
    $region28: #{tpu_custom_call.1} parent=1 // pred_region
      %s295 = ssub.s32 128, 128
      %296 = vsyncadd [#allocation5], %s295
      %s298 = sshll.u32 [#allocation4], 4
      %s299 = int_to_ptr.vmem [resolvable:$true] %s298
      %301 = dma.vmem_to_hbm [thread:$0]  %s299, 128, %s4, [#allocation5]
    $region29: #{tpu_custom_call.1} parent=1 // pred_fallthru
      _
    // Predicated region
    $region30: #{tpu_custom_call.1} parent=1 // pred_check
      _
    $region31: #{tpu_custom_call.1} parent=1 // pred_check_branch
      %303 = sbr.rel (0) target = $region33
    $region32: #{tpu_custom_call.1} parent=1 // pred_region
      %304 = dma.done [#allocation5], 128
    $region33: #{tpu_custom_call.1} parent=1 // pred_fallthru
      _
    %305 = vsyncpa [#allocation5], 1

</llo_original>
